<compile_context>
chip_gen: v5e
topology: v5e:2x2
jax: 0.10.0
libtpu: 0.0.40
codegen_flags: <defaults>
</compile_context>

<pallas_src>
import math

import jax
import jax.numpy as jnp
from jax.experimental import pallas as pl
from jax.experimental.pallas import tpu as pltpu


def _crf_l_kernel(x_ref, w_ref, b_ref, o_ref):
    # x_ref: (TM, P*H) bf16   w_ref: (P*H, P*N) bf16
    # b_ref: (1, P*N) f32     o_ref: (TM, P*N) f32
    acc = jnp.dot(x_ref[...], w_ref[...], preferred_element_type=jnp.float32)
    o_ref[...] = (acc + b_ref[...]).astype(o_ref.dtype)


def crf_l_forward(feats, weight, bias, tagset_size, *, tm=512):
    """feats: (B, S, H); weight: (T*T, H) [PyTorch layout]; bias: (T*T,).

    Returns (B*S, T, T) float32, matching CRF_L.forward.
    """
    B, S, H = feats.shape
    N = tagset_size * tagset_size
    M = B * S

    # Row-packing factor P: pack P logical rows per kernel row so the output
    # last dim (P*N) is a multiple of 128 lanes -> unmasked vector stores.
    if N % 128 == 0:
        P = 1
    else:
        P = 128 // math.gcd(N, 128)
        if P > 16:  # pathological tag sizes -> fall back to the plain layout
            P = 1
    # Fall back if the block-diagonal weight itself would blow the VMEM budget.
    if P > 1 and 2 * (P * H) * (P * N) * 2 > 4 * 1024 * 1024:
        P = 1

    x = feats.reshape(M, H).astype(jnp.bfloat16)
    w = weight.T.astype(jnp.bfloat16)            # (H, N)
    b = bias.reshape(1, N).astype(jnp.float32)   # (1, N)

    if P > 1:
        # Block-diagonal weight: w_blk[k*H + h, k*N + n] = w[h, n]
        eye = jnp.eye(P, dtype=w.dtype)
        w_k = jnp.einsum('kl,hn->khln', eye, w).reshape(P * H, P * N)
        b_k = jnp.tile(b, (1, P))                # (1, P*N)
    else:
        w_k, b_k = w, b

    KH = P * H
    KN = P * N

    # Pick TM (packed rows per block): multiple of 8, bounded so
    # 2 * (X tile + Y tile) + 2 * weight fits comfortably in scoped VMEM.
    row_bytes = KH * 2 + KN * 4
    tm = max(8, (min(int(tm), 1 << 20) // 8) * 8)
    vmem_budget = 8 * 1024 * 1024
    while tm > 8 and 2 * tm * row_bytes + 2 * KH * KN * 2 > vmem_budget:
        tm = max(8, ((tm // 2) // 8) * 8)

    # Pad M so packed-row count is a multiple of tm (no ragged tail blocks).
    mp_rows = -(-M // P)                 # packed rows
    mp_rows = -(-mp_rows // tm) * tm     # pad to whole blocks
    m_pad = mp_rows * P
    if m_pad != M:
        x = jnp.pad(x, ((0, m_pad - M), (0, 0)))
    xp = x.reshape(mp_rows, KH)          # xp[m, k*H + h] = x[m*P + k, h]

    grid = (mp_rows // tm,)

    out = pl.pallas_call(
        _crf_l_kernel,
        out_shape=jax.ShapeDtypeStruct((mp_rows, KN), jnp.float32),
        grid_spec=pltpu.PrefetchScalarGridSpec(
            num_scalar_prefetch=0,
            grid=grid,
            in_specs=[
                pl.BlockSpec((tm, KH), lambda i: (i, 0)),   # streamed X row-tiles
                pl.BlockSpec((KH, KN), lambda i: (0, 0)),   # resident weight
                pl.BlockSpec((1, KN), lambda i: (0, 0)),    # resident bias
            ],
            out_specs=pl.BlockSpec((tm, KN), lambda i: (i, 0)),
        ),
        compiler_params=pltpu.CompilerParams(
            # Row-tiles are independent -> shard across TCs on v7x megacore.
            dimension_semantics=("parallel",),
        ),
    )(xp, w_k, b_k)

    out = out.reshape(m_pad, N)
    if m_pad != M:
        out = out[:M]
    return out.reshape(M, tagset_size, tagset_size)


if __name__ == "__main__":
    # Small shapes consistent with the module: batch=2, seq=8, hidden=32, tagset=4
    B, S, H, T = 2, 8, 32, 4

    key = jax.random.PRNGKey(0)
    k_feats, k_w, k_b = jax.random.split(key, 3)

    feats = jax.random.normal(k_feats, (B, S, H), dtype=jnp.float32)
    # PyTorch Linear shapes: weight (T*T, H), bias (T*T,)
    weight = jax.random.normal(k_w, (T * T, H), dtype=jnp.float32) * 0.1
    bias = jax.random.normal(k_b, (T * T,), dtype=jnp.float32) * 0.1

    out = crf_l_forward(feats, weight, bias, T)
    out = jax.block_until_ready(out)
    assert out.shape == (B * S, T, T), out.shape

    # Reference with the same bf16 input rounding as the kernel (f32 accumulate).
    x_bf = feats.reshape(-1, H).astype(jnp.bfloat16).astype(jnp.float32)
    w_bf = weight.T.astype(jnp.bfloat16).astype(jnp.float32)
    ref_bf = (x_bf @ w_bf + bias).reshape(-1, T, T)
    assert jnp.allclose(out, ref_bf, atol=1e-4, rtol=1e-4), "mismatch vs bf16 ref"

    # Looser check against the full-f32 PyTorch-semantics reference.
    ref_f32 = (feats.reshape(-1, H) @ weight.T + bias).reshape(-1, T, T)
    assert jnp.allclose(out, ref_f32, atol=2e-2, rtol=2e-2), "mismatch vs f32 ref"

    # Second config: ragged M (not a multiple of the packed block) with tm=8 so
    # the grid has >1 step -> exercises pipelining, padding and tail slice-off.
    B2, S2 = 3, 50
    feats2 = jax.random.normal(jax.random.PRNGKey(1), (B2, S2, H), dtype=jnp.float32)
    out2 = jax.block_until_ready(crf_l_forward(feats2, weight, bias, T, tm=8))
    assert out2.shape == (B2 * S2, T, T), out2.shape
    x2 = feats2.reshape(-1, H).astype(jnp.bfloat16).astype(jnp.float32)
    ref2 = (x2 @ w_bf + bias).reshape(-1, T, T)
    assert jnp.allclose(out2, ref2, atol=1e-4, rtol=1e-4), "mismatch vs bf16 ref (ragged)"

    print("KERNEL_OK")
</pallas_src>

<mosaic_0001>
module attributes {stable_mosaic.version = 11 : i64} {
  func.func @_crf_l_kernel(%arg0: i32, %arg1: memref<512x256xbf16, #tpu.memory_space<vmem>>, %arg2: memref<256x128xbf16, #tpu.memory_space<vmem>>, %arg3: memref<1x128xf32, #tpu.memory_space<vmem>>, %arg4: memref<512x128xf32, #tpu.memory_space<vmem>>) attributes {dimension_semantics = [#tpu.dimension_semantics<parallel>], iteration_bounds = array<i64: 1>, scalar_prefetch = 0 : i64, scratch_operands = 0 : i64, tpu.core_type = #tpu.core_type<tc>, window_params = [{transform_indices = @transform_0, window_bounds = array<i64: 512, 256>}, {pipeline_mode = #tpu.pipeline_mode<synchronous>, transform_indices = @transform_1, window_bounds = array<i64: 256, 128>}, {pipeline_mode = #tpu.pipeline_mode<synchronous>, transform_indices = @transform_2, window_bounds = array<i64: 1, 128>}, {transform_indices = @transform_3, window_bounds = array<i64: 512, 128>}]} {
    %c0 = arith.constant 0 : index
    %c0_0 = arith.constant 0 : index
    %0 = vector.load %arg1[%c0, %c0_0] : memref<512x256xbf16, #tpu.memory_space<vmem>>, vector<512x256xbf16>
    %c0_1 = arith.constant 0 : index
    %c0_2 = arith.constant 0 : index
    %1 = vector.load %arg2[%c0_1, %c0_2] : memref<256x128xbf16, #tpu.memory_space<vmem>>, vector<256x128xbf16>
    %cst = arith.constant dense<0.000000e+00> : vector<512x128xf32>
    %2 = tpu.matmul %0, %1, %cst {dimension_numbers = #tpu.dot_dimension_numbers<[1], [0], [0], [1], [0, 0, 1, 1], [], []>} : vector<512x256xbf16>, vector<256x128xbf16>, vector<512x128xf32> -> vector<512x128xf32>
    %c0_3 = arith.constant 0 : index
    %c0_4 = arith.constant 0 : index
    %3 = vector.load %arg3[%c0_3, %c0_4] : memref<1x128xf32, #tpu.memory_space<vmem>>, vector<1x128xf32>
    %4 = vector.broadcast %3 : vector<1x128xf32> to vector<512x128xf32>
    %5 = arith.addf %2, %4 : vector<512x128xf32>
    %c0_5 = arith.constant 0 : index
    %c0_6 = arith.constant 0 : index
    %6 = vector.load %arg4[%c0_5, %c0_6] : memref<512x128xf32, #tpu.memory_space<vmem>>, vector<512x128xf32>
    tpu.vector_store %arg4[%c0_5, %c0_6], %5 {strides = array<i32>} : memref<512x128xf32, #tpu.memory_space<vmem>>, vector<512x128xf32>,
    return
  }
  func.func @transform_0(%arg0: i32) -> (i32, i32) {
    %c0_i32 = arith.constant 0 : i32
    %c0_i32_0 = arith.constant 0 : i32
    return %arg0, %c0_i32 : i32, i32
  }
  func.func @transform_1(%arg0: i32) -> (i32, i32) {
    %c0_i32 = arith.constant 0 : i32
    %c0_i32_0 = arith.constant 0 : i32
    %c0_i32_1 = arith.constant 0 : i32
    return %c0_i32, %c0_i32_0 : i32, i32
  }
  func.func @transform_2(%arg0: i32) -> (i32, i32) {
    %c0_i32 = arith.constant 0 : i32
    %c0_i32_0 = arith.constant 0 : i32
    %c0_i32_1 = arith.constant 0 : i32
    return %c0_i32, %c0_i32_0 : i32, i32
  }
  func.func @transform_3(%arg0: i32) -> (i32, i32) {
    %c0_i32 = arith.constant 0 : i32
    %c0_i32_0 = arith.constant 0 : i32
    return %arg0, %c0_i32 : i32, i32
  }
}

</mosaic_0001>

<llo_original>
// kernel: tpu_custom_call.1
$region0: #{tpu_custom_call.1}
  #allocation0 [shape = 'u32[]', space=smem, size = 0x4, offset = 0x4, fixed_abs, tag = 'smem constant byte address 0x4 - core index']
  #allocation1 [shape = 'u32[72,128]{1,0:T(1,128)}', space=vmem, size = 0x9000, scoped, tag = 'internal scratch']
  %s0 = inlined_call_operand.hbm [shape: bf16[512,256], index: 0, kind: input, shape index: {}]
  %s1 = inlined_call_operand.hbm [shape: bf16[256,128], index: 1, kind: input, shape index: {}]
  %s2 = inlined_call_operand.vmem [shape: f32[1,128], index: 2, kind: input, shape index: {}]
  %s3 = inlined_call_operand.hbm [shape: f32[512,128], index: 3, kind: output, shape index: {}]
  %s4 = sld [smem:[#allocation0]]
  $region30: #{tpu_custom_call.1} parent=0
    _
  %s6 = ssub.s32 1, %s4
  %s7 = scalar_select 0, %s6, %s4
  $region1: #{tpu_custom_call.1} parent=0
    #allocation2 [shape = 'u8[262144]{0}', space=vmem, size = 0x40000, scoped, tag = 'input window, operand 0, single buffered']
    #allocation3 [shape = 's32[1]{0}', space=sflag, size = 0x4, scoped, tag = 'scoped memory for tpu_custom_call.1']
    #allocation4 [shape = 's32[1]{0}', space=sflag, size = 0x4, scoped, tag = 'scoped memory for tpu_custom_call.1']
    #allocation5 [shape = 'u8[65536]{0}', space=vmem, size = 0x10000, scoped, tag = 'input window, operand 1, single buffered']
    #allocation6 [shape = 's32[1]{0}', space=sflag, size = 0x4, scoped, tag = 'scoped memory for tpu_custom_call.1']
    #allocation7 [shape = 'u8[262144]{0}', space=vmem, size = 0x40000, scoped, tag = 'output window, operand 0, single buffered']
    %8 = vsyncpa [#allocation3], 0
    %9 = vsyncpa [#allocation6], 0
    %10 = vsyncpa [#allocation4], 0
    // Predicated region
    $region2: #{tpu_custom_call.1} parent=1 // pred_check
      _
    $region3: #{tpu_custom_call.1} parent=1 // pred_check_branch
      %12 = sbr.rel (0) target = $region5
    $region4: #{tpu_custom_call.1} parent=1 // pred_region
      %14 = vsyncadd [#allocation3], 0
      %s15 = sshll.u32 %s0, 4
      %s16 = int_to_ptr.hbm [resolvable:$true] %s15
      %s17 = sshll.u32 [#allocation2], 4
      %s18 = int_to_ptr.vmem [resolvable:$true] %s17
      %23 = dma.hbm_to_vmem [thread:$0]  %s16, 8192, %s18, [#allocation3], 128, 128, 8
    $region5: #{tpu_custom_call.1} parent=1 // pred_fallthru
      _
    // Predicated region
    $region6: #{tpu_custom_call.1} parent=1 // pred_check
      _
    $region7: #{tpu_custom_call.1} parent=1 // pred_check_branch
      %25 = sbr.rel (0) target = $region9
    $region8: #{tpu_custom_call.1} parent=1 // pred_region
      %27 = vsyncadd [#allocation6], 0
      %s28 = sshll.u32 %s1, 4
      %s29 = int_to_ptr.hbm [resolvable:$true] %s28
      %s30 = sshll.u32 [#allocation5], 4
      %s31 = int_to_ptr.vmem [resolvable:$true] %s30
      %36 = dma.hbm_to_vmem [thread:$0]  %s29, 2048, %s31, [#allocation6], 64, 64, 4
    $region9: #{tpu_custom_call.1} parent=1 // pred_fallthru
      _
    // Predicated region
    $region10: #{tpu_custom_call.1} parent=1 // pred_check
      _
    $region11: #{tpu_custom_call.1} parent=1 // pred_check_branch
      %38 = sbr.rel (0) target = $region13
    $region12: #{tpu_custom_call.1} parent=1 // pred_region
      _
    $region13: #{tpu_custom_call.1} parent=1 // pred_fallthru
      _
    // Predicated region
    $region14: #{tpu_custom_call.1} parent=1 // pred_check
      _
    $region15: #{tpu_custom_call.1} parent=1 // pred_check_branch
      %40 = sbr.rel (0) target = $region17
    $region16: #{tpu_custom_call.1} parent=1 // pred_region
      %42 = dma.done [#allocation3], 8192
    $region17: #{tpu_custom_call.1} parent=1 // pred_fallthru
      _
    // Predicated region
    $region18: #{tpu_custom_call.1} parent=1 // pred_check
      _
    $region19: #{tpu_custom_call.1} parent=1 // pred_check_branch
      %44 = sbr.rel (0) target = $region21
    $region20: #{tpu_custom_call.1} parent=1 // pred_region
      %46 = dma.done [#allocation6], 2048
    $region21: #{tpu_custom_call.1} parent=1 // pred_fallthru
      _
    %v47 = vld [vmem:[#allocation2] sm:$0xff]
    %v48 = vld [vmem:[#allocation2 + $0x8] sm:$0xff]
    %v49 = vld [vmem:[#allocation2 + $0x10] sm:$0xff]
    %v50 = vld [vmem:[#allocation2 + $0x18] sm:$0xff]
    %v51 = vld [vmem:[#allocation2 + $0x20] sm:$0xff]
    %v52 = vld [vmem:[#allocation2 + $0x28] sm:$0xff]
    %v53 = vld [vmem:[#allocation2 + $0x30] sm:$0xff]
    %v54 = vld [vmem:[#allocation2 + $0x38] sm:$0xff]
    %v55 = vld [vmem:[#allocation2 + $0x40] sm:$0xff]
    %v56 = vld [vmem:[#allocation2 + $0x48] sm:$0xff]
    %v57 = vld [vmem:[#allocation2 + $0x50] sm:$0xff]
    %v58 = vld [vmem:[#allocation2 + $0x58] sm:$0xff]
    %v59 = vld [vmem:[#allocation2 + $0x60] sm:$0xff]
    %v60 = vld [vmem:[#allocation2 + $0x68] sm:$0xff]
    %v61 = vld [vmem:[#allocation2 + $0x70] sm:$0xff]
    %v62 = vld [vmem:[#allocation2 + $0x78] sm:$0xff]
    %v63 = vld [vmem:[#allocation2 + $0x80] sm:$0xff]
    %v64 = vld [vmem:[#allocation2 + $0x88] sm:$0xff]
    %v65 = vld [vmem:[#allocation2 + $0x90] sm:$0xff]
    %v66 = vld [vmem:[#allocation2 + $0x98] sm:$0xff]
    %v67 = vld [vmem:[#allocation2 + $0xa0] sm:$0xff]
    %v68 = vld [vmem:[#allocation2 + $0xa8] sm:$0xff]
    %v69 = vld [vmem:[#allocation2 + $0xb0] sm:$0xff]
    %v70 = vld [vmem:[#allocation2 + $0xb8] sm:$0xff]
    %v71 = vld [vmem:[#allocation2 + $0xc0] sm:$0xff]
    %v72 = vld [vmem:[#allocation2 + $0xc8] sm:$0xff]
    %v73 = vld [vmem:[#allocation2 + $0xd0] sm:$0xff]
    %v74 = vld [vmem:[#allocation2 + $0xd8] sm:$0xff]
    %v75 = vld [vmem:[#allocation2 + $0xe0] sm:$0xff]
    %v76 = vld [vmem:[#allocation2 + $0xe8] sm:$0xff]
    %v77 = vld [vmem:[#allocation2 + $0xf0] sm:$0xff]
    %v78 = vld [vmem:[#allocation2 + $0xf8] sm:$0xff]
    %v79 = vld [vmem:[#allocation2 + $0x100] sm:$0xff]
    %v80 = vld [vmem:[#allocation2 + $0x108] sm:$0xff]
    %v81 = vld [vmem:[#allocation2 + $0x110] sm:$0xff]
    %v82 = vld [vmem:[#allocation2 + $0x118] sm:$0xff]
    %v83 = vld [vmem:[#allocation2 + $0x120] sm:$0xff]
    %v84 = vld [vmem:[#allocation2 + $0x128] sm:$0xff]
    %v85 = vld [vmem:[#allocation2 + $0x130] sm:$0xff]
    %v86 = vld [vmem:[#allocation2 + $0x138] sm:$0xff]
    %v87 = vld [vmem:[#allocation2 + $0x140] sm:$0xff]
    %v88 = vld [vmem:[#allocation2 + $0x148] sm:$0xff]
    %v89 = vld [vmem:[#allocation2 + $0x150] sm:$0xff]
    %v90 = vld [vmem:[#allocation2 + $0x158] sm:$0xff]
    %v91 = vld [vmem:[#allocation2 + $0x160] sm:$0xff]
    %v92 = vld [vmem:[#allocation2 + $0x168] sm:$0xff]
    %v93 = vld [vmem:[#allocation2 + $0x170] sm:$0xff]
    %v94 = vld [vmem:[#allocation2 + $0x178] sm:$0xff]
    %v95 = vld [vmem:[#allocation2 + $0x180] sm:$0xff]
    %v96 = vld [vmem:[#allocation2 + $0x188] sm:$0xff]
    %v97 = vld [vmem:[#allocation2 + $0x190] sm:$0xff]
    %v98 = vld [vmem:[#allocation2 + $0x198] sm:$0xff]
    %v99 = vld [vmem:[#allocation2 + $0x1a0] sm:$0xff]
    %v100 = vld [vmem:[#allocation2 + $0x1a8] sm:$0xff]
    %v101 = vld [vmem:[#allocation2 + $0x1b0] sm:$0xff]
    %v102 = vld [vmem:[#allocation2 + $0x1b8] sm:$0xff]
    %v103 = vld [vmem:[#allocation2 + $0x1c0] sm:$0xff]
    %v104 = vld [vmem:[#allocation2 + $0x1c8] sm:$0xff]
    %v105 = vld [vmem:[#allocation2 + $0x1d0] sm:$0xff]
    %v106 = vld [vmem:[#allocation2 + $0x1d8] sm:$0xff]
    %v107 = vld [vmem:[#allocation2 + $0x1e0] sm:$0xff]
    %v108 = vld [vmem:[#allocation2 + $0x1e8] sm:$0xff]
    %v109 = vld [vmem:[#allocation2 + $0x1f0] sm:$0xff]
    %v110 = vld [vmem:[#allocation2 + $0x1f8] sm:$0xff]
    %v111 = vld [vmem:[#allocation5] sm:$0xf]
    %v112 = vld [vmem:[#allocation5 + $0x4] sm:$0xf]
    %v113 = vld [vmem:[#allocation5 + $0x8] sm:$0xf]
    %v114 = vld [vmem:[#allocation5 + $0xc] sm:$0xf]
    %v115 = vld [vmem:[#allocation5 + $0x10] sm:$0xf]
    %v116 = vld [vmem:[#allocation5 + $0x14] sm:$0xf]
    %v117 = vld [vmem:[#allocation5 + $0x18] sm:$0xf]
    %v118 = vld [vmem:[#allocation5 + $0x1c] sm:$0xf]
    %v119 = vld [vmem:[#allocation5 + $0x20] sm:$0xf]
    %v120 = vld [vmem:[#allocation5 + $0x24] sm:$0xf]
    %v121 = vld [vmem:[#allocation5 + $0x28] sm:$0xf]
    %v122 = vld [vmem:[#allocation5 + $0x2c] sm:$0xf]
    %v123 = vld [vmem:[#allocation5 + $0x30] sm:$0xf]
    %v124 = vld [vmem:[#allocation5 + $0x34] sm:$0xf]
    %v125 = vld [vmem:[#allocation5 + $0x38] sm:$0xf]
    %v126 = vld [vmem:[#allocation5 + $0x3c] sm:$0xf]
    %v127 = vld [vmem:[#allocation5 + $0x40] sm:$0xf]
    %v128 = vld [vmem:[#allocation5 + $0x44] sm:$0xf]
    %v129 = vld [vmem:[#allocation5 + $0x48] sm:$0xf]
    %v130 = vld [vmem:[#allocation5 + $0x4c] sm:$0xf]
    %v131 = vld [vmem:[#allocation5 + $0x50] sm:$0xf]
    %v132 = vld [vmem:[#allocation5 + $0x54] sm:$0xf]
    %v133 = vld [vmem:[#allocation5 + $0x58] sm:$0xf]
    %v134 = vld [vmem:[#allocation5 + $0x5c] sm:$0xf]
    %v135 = vld [vmem:[#allocation5 + $0x60] sm:$0xf]
    %v136 = vld [vmem:[#allocation5 + $0x64] sm:$0xf]
    %v137 = vld [vmem:[#allocation5 + $0x68] sm:$0xf]
    %v138 = vld [vmem:[#allocation5 + $0x6c] sm:$0xf]
    %v139 = vld [vmem:[#allocation5 + $0x70] sm:$0xf]
    %v140 = vld [vmem:[#allocation5 + $0x74] sm:$0xf]
    %v141 = vld [vmem:[#allocation5 + $0x78] sm:$0xf]
    %v142 = vld [vmem:[#allocation5 + $0x7c] sm:$0xf]
    %v143 = vld [vmem:[%s2] sm:$0x1]
    %v145 = vperm.slane %v143, 0
    %v211 = vunpack.c.l.b16 %v47
    %v212 = vunpack.c.h.b16 %v47
    %v213 = vunpack.c.l.b16 %v48
    %v214 = vunpack.c.h.b16 %v48
    %v215 = vunpack.c.l.b16 %v49
    %v216 = vunpack.c.h.b16 %v49
    %v217 = vunpack.c.l.b16 %v50
    %v218 = vunpack.c.h.b16 %v50
    %v219 = vunpack.c.l.b16 %v51
    %v220 = vunpack.c.h.b16 %v51
    %v221 = vunpack.c.l.b16 %v52
    %v222 = vunpack.c.h.b16 %v52
    %v223 = vunpack.c.l.b16 %v53
    %v224 = vunpack.c.h.b16 %v53
    %v225 = vunpack.c.l.b16 %v54
    %v226 = vunpack.c.h.b16 %v54
    %v227 = vunpack.c.l.b16 %v55
    %v228 = vunpack.c.h.b16 %v55
    %v229 = vunpack.c.l.b16 %v56
    %v230 = vunpack.c.h.b16 %v56
    %v231 = vunpack.c.l.b16 %v57
    %v232 = vunpack.c.h.b16 %v57
    %v233 = vunpack.c.l.b16 %v58
    %v234 = vunpack.c.h.b16 %v58
    %v235 = vunpack.c.l.b16 %v59
    %v236 = vunpack.c.h.b16 %v59
    %v237 = vunpack.c.l.b16 %v60
    %v238 = vunpack.c.h.b16 %v60
    %v239 = vunpack.c.l.b16 %v61
    %v240 = vunpack.c.h.b16 %v61
    %v241 = vunpack.c.l.b16 %v62
    %v242 = vunpack.c.h.b16 %v62
    %v243 = vunpack.c.l.b16 %v63
    %v244 = vunpack.c.h.b16 %v63
    %v245 = vunpack.c.l.b16 %v64
    %v246 = vunpack.c.h.b16 %v64
    %v247 = vunpack.c.l.b16 %v65
    %v248 = vunpack.c.h.b16 %v65
    %v249 = vunpack.c.l.b16 %v66
    %v250 = vunpack.c.h.b16 %v66
    %v251 = vunpack.c.l.b16 %v67
    %v252 = vunpack.c.h.b16 %v67
    %v253 = vunpack.c.l.b16 %v68
    %v254 = vunpack.c.h.b16 %v68
    %v255 = vunpack.c.l.b16 %v69
    %v256 = vunpack.c.h.b16 %v69
    %v257 = vunpack.c.l.b16 %v70
    %v258 = vunpack.c.h.b16 %v70
    %v259 = vunpack.c.l.b16 %v71
    %v260 = vunpack.c.h.b16 %v71
    %v261 = vunpack.c.l.b16 %v72
    %v262 = vunpack.c.h.b16 %v72
    %v263 = vunpack.c.l.b16 %v73
    %v264 = vunpack.c.h.b16 %v73
    %v265 = vunpack.c.l.b16 %v74
    %v266 = vunpack.c.h.b16 %v74
    %v267 = vunpack.c.l.b16 %v75
    %v268 = vunpack.c.h.b16 %v75
    %v269 = vunpack.c.l.b16 %v76
    %v270 = vunpack.c.h.b16 %v76
    %v271 = vunpack.c.l.b16 %v77
    %v272 = vunpack.c.h.b16 %v77
    %v273 = vunpack.c.l.b16 %v78
    %v274 = vunpack.c.h.b16 %v78
    %v275 = vunpack.c.l.b16 %v79
    %v276 = vunpack.c.h.b16 %v79
    %v277 = vunpack.c.l.b16 %v80
    %v278 = vunpack.c.h.b16 %v80
    %v279 = vunpack.c.l.b16 %v81
    %v280 = vunpack.c.h.b16 %v81
    %v281 = vunpack.c.l.b16 %v82
    %v282 = vunpack.c.h.b16 %v82
    %v283 = vunpack.c.l.b16 %v83
    %v284 = vunpack.c.h.b16 %v83
    %v285 = vunpack.c.l.b16 %v84
    %v286 = vunpack.c.h.b16 %v84
    %v287 = vunpack.c.l.b16 %v85
    %v288 = vunpack.c.h.b16 %v85
    %v289 = vunpack.c.l.b16 %v86
    %v290 = vunpack.c.h.b16 %v86
    %v291 = vunpack.c.l.b16 %v87
    %v292 = vunpack.c.h.b16 %v87
    %v293 = vunpack.c.l.b16 %v88
    %v294 = vunpack.c.h.b16 %v88
    %v295 = vunpack.c.l.b16 %v89
    %v296 = vunpack.c.h.b16 %v89
    %v297 = vunpack.c.l.b16 %v90
    %v298 = vunpack.c.h.b16 %v90
    %v299 = vunpack.c.l.b16 %v91
    %v300 = vunpack.c.h.b16 %v91
    %v301 = vunpack.c.l.b16 %v92
    %v302 = vunpack.c.h.b16 %v92
    %v303 = vunpack.c.l.b16 %v93
    %v304 = vunpack.c.h.b16 %v93
    %v305 = vunpack.c.l.b16 %v94
    %v306 = vunpack.c.h.b16 %v94
    %v307 = vunpack.c.l.b16 %v95
    %v308 = vunpack.c.h.b16 %v95
    %v309 = vunpack.c.l.b16 %v96
    %v310 = vunpack.c.h.b16 %v96
    %v311 = vunpack.c.l.b16 %v97
    %v312 = vunpack.c.h.b16 %v97
    %v313 = vunpack.c.l.b16 %v98
    %v314 = vunpack.c.h.b16 %v98
    %v315 = vunpack.c.l.b16 %v99
    %v316 = vunpack.c.h.b16 %v99
    %v317 = vunpack.c.l.b16 %v100
    %v318 = vunpack.c.h.b16 %v100
    %v319 = vunpack.c.l.b16 %v101
    %v320 = vunpack.c.h.b16 %v101
    %v321 = vunpack.c.l.b16 %v102
    %v322 = vunpack.c.h.b16 %v102
    %v323 = vunpack.c.l.b16 %v103
    %v324 = vunpack.c.h.b16 %v103
    %v325 = vunpack.c.l.b16 %v104
    %v326 = vunpack.c.h.b16 %v104
    %v327 = vunpack.c.l.b16 %v105
    %v328 = vunpack.c.h.b16 %v105
    %v329 = vunpack.c.l.b16 %v106
    %v330 = vunpack.c.h.b16 %v106
    %v331 = vunpack.c.l.b16 %v107
    %v332 = vunpack.c.h.b16 %v107
    %v333 = vunpack.c.l.b16 %v108
    %v334 = vunpack.c.h.b16 %v108
    %v335 = vunpack.c.l.b16 %v109
    %v336 = vunpack.c.h.b16 %v109
    %v337 = vunpack.c.l.b16 %v110
    %v338 = vunpack.c.h.b16 %v110
    %v339 = vpack.c.b16 %v213, %v211
    %v340 = vpack.c.b16 %v214, %v212
    %v341 = vpack.c.b16 %v217, %v215
    %v342 = vpack.c.b16 %v218, %v216
    %v343 = vpack.c.b16 %v221, %v219
    %v344 = vpack.c.b16 %v222, %v220
    %v345 = vpack.c.b16 %v225, %v223
    %v346 = vpack.c.b16 %v226, %v224
    %v347 = vpack.c.b16 %v229, %v227
    %v348 = vpack.c.b16 %v230, %v228
    %v349 = vpack.c.b16 %v233, %v231
    %v350 = vpack.c.b16 %v234, %v232
    %v351 = vpack.c.b16 %v237, %v235
    %v352 = vpack.c.b16 %v238, %v236
    %v353 = vpack.c.b16 %v241, %v239
    %v354 = vpack.c.b16 %v242, %v240
    %v355 = vpack.c.b16 %v245, %v243
    %v356 = vpack.c.b16 %v246, %v244
    %v357 = vpack.c.b16 %v249, %v247
    %v358 = vpack.c.b16 %v250, %v248
    %v359 = vpack.c.b16 %v253, %v251
    %v360 = vpack.c.b16 %v254, %v252
    %v361 = vpack.c.b16 %v257, %v255
    %v362 = vpack.c.b16 %v258, %v256
    %v363 = vpack.c.b16 %v261, %v259
    %v364 = vpack.c.b16 %v262, %v260
    %v365 = vpack.c.b16 %v265, %v263
    %v366 = vpack.c.b16 %v266, %v264
    %v367 = vpack.c.b16 %v269, %v267
    %v368 = vpack.c.b16 %v270, %v268
    %v369 = vpack.c.b16 %v273, %v271
    %v370 = vpack.c.b16 %v274, %v272
    %v371 = vpack.c.b16 %v277, %v275
    %v372 = vpack.c.b16 %v278, %v276
    %v373 = vpack.c.b16 %v281, %v279
    %v374 = vpack.c.b16 %v282, %v280
    %v375 = vpack.c.b16 %v285, %v283
    %v376 = vpack.c.b16 %v286, %v284
    %v377 = vpack.c.b16 %v289, %v287
    %v378 = vpack.c.b16 %v290, %v288
    %v379 = vpack.c.b16 %v293, %v291
    %v380 = vpack.c.b16 %v294, %v292
    %v381 = vpack.c.b16 %v297, %v295
    %v382 = vpack.c.b16 %v298, %v296
    %v383 = vpack.c.b16 %v301, %v299
    %v384 = vpack.c.b16 %v302, %v300
    %v385 = vpack.c.b16 %v305, %v303
    %v386 = vpack.c.b16 %v306, %v304
    %v387 = vpack.c.b16 %v309, %v307
    %v388 = vpack.c.b16 %v310, %v308
    %v389 = vpack.c.b16 %v313, %v311
    %v390 = vpack.c.b16 %v314, %v312
    %v391 = vpack.c.b16 %v317, %v315
    %v392 = vpack.c.b16 %v318, %v316
    %v393 = vpack.c.b16 %v321, %v319
    %v394 = vpack.c.b16 %v322, %v320
    %v395 = vpack.c.b16 %v325, %v323
    %v396 = vpack.c.b16 %v326, %v324
    %v397 = vpack.c.b16 %v329, %v327
    %v398 = vpack.c.b16 %v330, %v328
    %v399 = vpack.c.b16 %v333, %v331
    %v400 = vpack.c.b16 %v334, %v332
    %v401 = vpack.c.b16 %v337, %v335
    %v402 = vpack.c.b16 %v338, %v336
    %v499 = vunpack.c.l.b16 %v111
    %v500 = vunpack.c.l.b16 %v112
    %v501 = vunpack.c.l.b16 %v113
    %v502 = vunpack.c.l.b16 %v114
    %v503 = vunpack.c.l.b16 %v115
    %v504 = vunpack.c.l.b16 %v116
    %v505 = vunpack.c.l.b16 %v117
    %v506 = vunpack.c.l.b16 %v118
    %v507 = vunpack.c.l.b16 %v119
    %v508 = vunpack.c.l.b16 %v120
    %v509 = vunpack.c.l.b16 %v121
    %v510 = vunpack.c.l.b16 %v122
    %v511 = vunpack.c.l.b16 %v123
    %v512 = vunpack.c.l.b16 %v124
    %v513 = vunpack.c.l.b16 %v125
    %v514 = vunpack.c.l.b16 %v126
    %v515 = vunpack.c.l.b16 %v127
    %v516 = vunpack.c.l.b16 %v128
    %v517 = vunpack.c.l.b16 %v129
    %v518 = vunpack.c.l.b16 %v130
    %v519 = vunpack.c.l.b16 %v131
    %v520 = vunpack.c.l.b16 %v132
    %v521 = vunpack.c.l.b16 %v133
    %v522 = vunpack.c.l.b16 %v134
    %v523 = vunpack.c.l.b16 %v135
    %v524 = vunpack.c.l.b16 %v136
    %v525 = vunpack.c.l.b16 %v137
    %v526 = vunpack.c.l.b16 %v138
    %v527 = vunpack.c.l.b16 %v139
    %v528 = vunpack.c.l.b16 %v140
    %v529 = vunpack.c.l.b16 %v141
    %v530 = vunpack.c.l.b16 %v142
    %v531 = vpack.c.b16 %v500, %v499
    %v532 = vpack.c.b16 %v502, %v501
    %v533 = vpack.c.b16 %v504, %v503
    %v534 = vpack.c.b16 %v506, %v505
    %v535 = vpack.c.b16 %v508, %v507
    %v536 = vpack.c.b16 %v510, %v509
    %v537 = vpack.c.b16 %v512, %v511
    %v538 = vpack.c.b16 %v514, %v513
    %v539 = vpack.c.b16 %v516, %v515
    %v540 = vpack.c.b16 %v518, %v517
    %v541 = vpack.c.b16 %v520, %v519
    %v542 = vpack.c.b16 %v522, %v521
    %v543 = vpack.c.b16 %v524, %v523
    %v544 = vpack.c.b16 %v526, %v525
    %v545 = vpack.c.b16 %v528, %v527
    %v546 = vpack.c.b16 %v530, %v529
    %563 = vmatpush.bf16.msra.mxu0 %v538
    %564 = vmatpush.bf16.msra.mxu0 %v537
    %565 = vmatpush.bf16.msra.mxu0 %v536
    %566 = vmatpush.bf16.msra.mxu0 %v535
    %567 = vmatpush.bf16.msra.mxu0 %v534
    %568 = vmatpush.bf16.msra.mxu0 %v533
    %569 = vmatpush.bf16.msra.mxu0 %v532
    %570 = vmatpush.bf16.msra.mxu0 %v531
    %571 = vmatmul.bf16.gmra.mxu0 %v339
    %v572 = vpop.f32.mrf.mxu0
    %v573 = vadd.f32 %v145, %v572
    %v574 = vpop.f32.mrf.mxu0
    %v575 = vadd.f32 %v145, %v574
    %576 = vmatmul.bf16.gmra.mxu0 %v341
    %v577 = vpop.f32.mrf.mxu0
    %v578 = vadd.f32 %v145, %v577
    %v579 = vpop.f32.mrf.mxu0
    %v580 = vadd.f32 %v145, %v579
    %581 = vmatmul.bf16.gmra.mxu0 %v343
    %v582 = vpop.f32.mrf.mxu0
    %v583 = vadd.f32 %v145, %v582
    %v584 = vpop.f32.mrf.mxu0
    %v585 = vadd.f32 %v145, %v584
    %586 = vmatmul.bf16.gmra.mxu0 %v345
    %v587 = vpop.f32.mrf.mxu0
    %v588 = vadd.f32 %v145, %v587
    %v589 = vpop.f32.mrf.mxu0
    %v590 = vadd.f32 %v145, %v589
    %591 = vmatmul.bf16.gmra.mxu0 %v347
    %v592 = vpop.f32.mrf.mxu0
    %v593 = vadd.f32 %v145, %v592
    %v594 = vpop.f32.mrf.mxu0
    %v595 = vadd.f32 %v145, %v594
    %596 = vmatmul.bf16.gmra.mxu0 %v349
    %v597 = vpop.f32.mrf.mxu0
    %v598 = vadd.f32 %v145, %v597
    %v599 = vpop.f32.mrf.mxu0
    %v600 = vadd.f32 %v145, %v599
    %601 = vmatmul.bf16.gmra.mxu0 %v351
    %v602 = vpop.f32.mrf.mxu0
    %v603 = vadd.f32 %v145, %v602
    %v604 = vpop.f32.mrf.mxu0
    %v605 = vadd.f32 %v145, %v604
    %606 = vmatmul.bf16.gmra.mxu0 %v353
    %v607 = vpop.f32.mrf.mxu0
    %v608 = vadd.f32 %v145, %v607
    %v609 = vpop.f32.mrf.mxu0
    %v610 = vadd.f32 %v145, %v609
    %611 = vmatmul.bf16.gmra.mxu0 %v355
    %v612 = vpop.f32.mrf.mxu0
    %v613 = vadd.f32 %v145, %v612
    %v614 = vpop.f32.mrf.mxu0
    %v615 = vadd.f32 %v145, %v614
    %616 = vmatmul.bf16.gmra.mxu0 %v357
    %v617 = vpop.f32.mrf.mxu0
    %v618 = vadd.f32 %v145, %v617
    %v619 = vpop.f32.mrf.mxu0
    %v620 = vadd.f32 %v145, %v619
    %621 = vmatmul.bf16.gmra.mxu0 %v359
    %v622 = vpop.f32.mrf.mxu0
    %v623 = vadd.f32 %v145, %v622
    %v624 = vpop.f32.mrf.mxu0
    %v625 = vadd.f32 %v145, %v624
    %626 = vmatmul.bf16.gmra.mxu0 %v361
    %v627 = vpop.f32.mrf.mxu0
    %v628 = vadd.f32 %v145, %v627
    %v629 = vpop.f32.mrf.mxu0
    %v630 = vadd.f32 %v145, %v629
    %631 = vmatmul.bf16.gmra.mxu0 %v363
    %v632 = vpop.f32.mrf.mxu0
    %v633 = vadd.f32 %v145, %v632
    %v634 = vpop.f32.mrf.mxu0
    %v635 = vadd.f32 %v145, %v634
    %636 = vmatmul.bf16.gmra.mxu0 %v365
    %v637 = vpop.f32.mrf.mxu0
    %v638 = vadd.f32 %v145, %v637
    %v639 = vpop.f32.mrf.mxu0
    %v640 = vadd.f32 %v145, %v639
    %641 = vmatmul.bf16.gmra.mxu0 %v367
    %v642 = vpop.f32.mrf.mxu0
    %v643 = vadd.f32 %v145, %v642
    %v644 = vpop.f32.mrf.mxu0
    %v645 = vadd.f32 %v145, %v644
    %646 = vmatmul.bf16.gmra.mxu0 %v369
    %v647 = vpop.f32.mrf.mxu0
    %v648 = vadd.f32 %v145, %v647
    %v649 = vpop.f32.mrf.mxu0
    %v650 = vadd.f32 %v145, %v649
    %651 = vmatmul.bf16.gmra.mxu0 %v371
    %v652 = vpop.f32.mrf.mxu0
    %v653 = vadd.f32 %v145, %v652
    %v654 = vpop.f32.mrf.mxu0
    %v655 = vadd.f32 %v145, %v654
    %656 = vmatmul.bf16.gmra.mxu0 %v373
    %v657 = vpop.f32.mrf.mxu0
    %v658 = vadd.f32 %v145, %v657
    %v659 = vpop.f32.mrf.mxu0
    %v660 = vadd.f32 %v145, %v659
    %661 = vmatmul.bf16.gmra.mxu0 %v375
    %v662 = vpop.f32.mrf.mxu0
    %v663 = vadd.f32 %v145, %v662
    %v664 = vpop.f32.mrf.mxu0
    %v665 = vadd.f32 %v145, %v664
    %666 = vmatmul.bf16.gmra.mxu0 %v377
    %v667 = vpop.f32.mrf.mxu0
    %v668 = vadd.f32 %v145, %v667
    %v669 = vpop.f32.mrf.mxu0
    %v670 = vadd.f32 %v145, %v669
    %671 = vmatmul.bf16.gmra.mxu0 %v379
    %v672 = vpop.f32.mrf.mxu0
    %v673 = vadd.f32 %v145, %v672
    %v674 = vpop.f32.mrf.mxu0
    %v675 = vadd.f32 %v145, %v674
    %676 = vmatmul.bf16.gmra.mxu0 %v381
    %v677 = vpop.f32.mrf.mxu0
    %v678 = vadd.f32 %v145, %v677
    %v679 = vpop.f32.mrf.mxu0
    %v680 = vadd.f32 %v145, %v679
    %681 = vmatmul.bf16.gmra.mxu0 %v383
    %v682 = vpop.f32.mrf.mxu0
    %v683 = vadd.f32 %v145, %v682
    %v684 = vpop.f32.mrf.mxu0
    %v685 = vadd.f32 %v145, %v684
    %686 = vmatmul.bf16.gmra.mxu0 %v385
    %v687 = vpop.f32.mrf.mxu0
    %v688 = vadd.f32 %v145, %v687
    %v689 = vpop.f32.mrf.mxu0
    %v690 = vadd.f32 %v145, %v689
    %691 = vmatmul.bf16.gmra.mxu0 %v387
    %v692 = vpop.f32.mrf.mxu0
    %v693 = vadd.f32 %v145, %v692
    %v694 = vpop.f32.mrf.mxu0
    %v695 = vadd.f32 %v145, %v694
    %696 = vmatmul.bf16.gmra.mxu0 %v389
    %v697 = vpop.f32.mrf.mxu0
    %v698 = vadd.f32 %v145, %v697
    %v699 = vpop.f32.mrf.mxu0
    %v700 = vadd.f32 %v145, %v699
    %701 = vmatmul.bf16.gmra.mxu0 %v391
    %v702 = vpop.f32.mrf.mxu0
    %v703 = vadd.f32 %v145, %v702
    %v704 = vpop.f32.mrf.mxu0
    %v705 = vadd.f32 %v145, %v704
    %706 = vmatmul.bf16.gmra.mxu0 %v393
    %v707 = vpop.f32.mrf.mxu0
    %v708 = vadd.f32 %v145, %v707
    %v709 = vpop.f32.mrf.mxu0
    %v710 = vadd.f32 %v145, %v709
    %711 = vmatmul.bf16.gmra.mxu0 %v395
    %v712 = vpop.f32.mrf.mxu0
    %v713 = vadd.f32 %v145, %v712
    %v714 = vpop.f32.mrf.mxu0
    %v715 = vadd.f32 %v145, %v714
    %716 = vmatmul.bf16.gmra.mxu0 %v397
    %v717 = vpop.f32.mrf.mxu0
    %v718 = vadd.f32 %v145, %v717
    %v719 = vpop.f32.mrf.mxu0
    %v720 = vadd.f32 %v145, %v719
    %721 = vmatmul.bf16.gmra.mxu0 %v399
    %v722 = vpop.f32.mrf.mxu0
    %v723 = vadd.f32 %v145, %v722
    %v724 = vpop.f32.mrf.mxu0
    %v725 = vadd.f32 %v145, %v724
    %726 = vmatmul.bf16.gmra.mxu0 %v401
    %v727 = vpop.f32.mrf.mxu0
    %v728 = vadd.f32 %v145, %v727
    %v729 = vpop.f32.mrf.mxu0
    %v730 = vadd.f32 %v145, %v729
    %731 = vdwg.mxu0
    %732 = vmatpush.bf16.msra.mxu0 %v546
    %733 = vmatpush.bf16.msra.mxu0 %v545
    %734 = vmatpush.bf16.msra.mxu0 %v544
    %735 = vmatpush.bf16.msra.mxu0 %v543
    %736 = vmatpush.bf16.msra.mxu0 %v542
    %737 = vmatpush.bf16.msra.mxu0 %v541
    %738 = vmatpush.bf16.msra.mxu0 %v540
    %739 = vmatpush.bf16.msra.mxu0 %v539
    %740 = vmatmul.bf16.gmra.mxu0 %v340
    %v741 = vpop.f32.mrf.mxu0
    %v742 = vadd.f32 %v573, %v741
    %v743 = vpop.f32.mrf.mxu0
    %v744 = vadd.f32 %v575, %v743
    %745 = vmatmul.bf16.gmra.mxu0 %v342
    %v746 = vpop.f32.mrf.mxu0
    %v747 = vadd.f32 %v578, %v746
    %v748 = vpop.f32.mrf.mxu0
    %v749 = vadd.f32 %v580, %v748
    %750 = vmatmul.bf16.gmra.mxu0 %v344
    %v751 = vpop.f32.mrf.mxu0
    %v752 = vadd.f32 %v583, %v751
    %v753 = vpop.f32.mrf.mxu0
    %v754 = vadd.f32 %v585, %v753
    %755 = vmatmul.bf16.gmra.mxu0 %v346
    %v756 = vpop.f32.mrf.mxu0
    %v757 = vadd.f32 %v588, %v756
    %v758 = vpop.f32.mrf.mxu0
    %v759 = vadd.f32 %v590, %v758
    %760 = vmatmul.bf16.gmra.mxu0 %v348
    %v761 = vpop.f32.mrf.mxu0
    %v762 = vadd.f32 %v593, %v761
    %v763 = vpop.f32.mrf.mxu0
    %v764 = vadd.f32 %v595, %v763
    %765 = vmatmul.bf16.gmra.mxu0 %v350
    %v766 = vpop.f32.mrf.mxu0
    %v767 = vadd.f32 %v598, %v766
    %v768 = vpop.f32.mrf.mxu0
    %v769 = vadd.f32 %v600, %v768
    %770 = vmatmul.bf16.gmra.mxu0 %v352
    %v771 = vpop.f32.mrf.mxu0
    %v772 = vadd.f32 %v603, %v771
    %v773 = vpop.f32.mrf.mxu0
    %v774 = vadd.f32 %v605, %v773
    %775 = vmatmul.bf16.gmra.mxu0 %v354
    %v776 = vpop.f32.mrf.mxu0
    %v777 = vadd.f32 %v608, %v776
    %v778 = vpop.f32.mrf.mxu0
    %v779 = vadd.f32 %v610, %v778
    %780 = vmatmul.bf16.gmra.mxu0 %v356
    %v781 = vpop.f32.mrf.mxu0
    %v782 = vadd.f32 %v613, %v781
    %v783 = vpop.f32.mrf.mxu0
    %v784 = vadd.f32 %v615, %v783
    %785 = vmatmul.bf16.gmra.mxu0 %v358
    %v786 = vpop.f32.mrf.mxu0
    %v787 = vadd.f32 %v618, %v786
    %v788 = vpop.f32.mrf.mxu0
    %v789 = vadd.f32 %v620, %v788
    %790 = vmatmul.bf16.gmra.mxu0 %v360
    %v791 = vpop.f32.mrf.mxu0
    %v792 = vadd.f32 %v623, %v791
    %v793 = vpop.f32.mrf.mxu0
    %v794 = vadd.f32 %v625, %v793
    %795 = vmatmul.bf16.gmra.mxu0 %v362
    %v796 = vpop.f32.mrf.mxu0
    %v797 = vadd.f32 %v628, %v796
    %v798 = vpop.f32.mrf.mxu0
    %v799 = vadd.f32 %v630, %v798
    %800 = vmatmul.bf16.gmra.mxu0 %v364
    %v801 = vpop.f32.mrf.mxu0
    %v802 = vadd.f32 %v633, %v801
    %v803 = vpop.f32.mrf.mxu0
    %v804 = vadd.f32 %v635, %v803
    %805 = vmatmul.bf16.gmra.mxu0 %v366
    %v806 = vpop.f32.mrf.mxu0
    %v807 = vadd.f32 %v638, %v806
    %v808 = vpop.f32.mrf.mxu0
    %v809 = vadd.f32 %v640, %v808
    %810 = vmatmul.bf16.gmra.mxu0 %v368
    %v811 = vpop.f32.mrf.mxu0
    %v812 = vadd.f32 %v643, %v811
    %v813 = vpop.f32.mrf.mxu0
    %v814 = vadd.f32 %v645, %v813
    %815 = vmatmul.bf16.gmra.mxu0 %v370
    %v816 = vpop.f32.mrf.mxu0
    %v817 = vadd.f32 %v648, %v816
    %v818 = vpop.f32.mrf.mxu0
    %v819 = vadd.f32 %v650, %v818
    %820 = vmatmul.bf16.gmra.mxu0 %v372
    %v821 = vpop.f32.mrf.mxu0
    %v822 = vadd.f32 %v653, %v821
    %v823 = vpop.f32.mrf.mxu0
    %v824 = vadd.f32 %v655, %v823
    %825 = vmatmul.bf16.gmra.mxu0 %v374
    %v826 = vpop.f32.mrf.mxu0
    %v827 = vadd.f32 %v658, %v826
    %v828 = vpop.f32.mrf.mxu0
    %v829 = vadd.f32 %v660, %v828
    %830 = vmatmul.bf16.gmra.mxu0 %v376
    %v831 = vpop.f32.mrf.mxu0
    %v832 = vadd.f32 %v663, %v831
    %v833 = vpop.f32.mrf.mxu0
    %v834 = vadd.f32 %v665, %v833
    %835 = vmatmul.bf16.gmra.mxu0 %v378
    %v836 = vpop.f32.mrf.mxu0
    %v837 = vadd.f32 %v668, %v836
    %v838 = vpop.f32.mrf.mxu0
    %v839 = vadd.f32 %v670, %v838
    %840 = vmatmul.bf16.gmra.mxu0 %v380
    %v841 = vpop.f32.mrf.mxu0
    %v842 = vadd.f32 %v673, %v841
    %v843 = vpop.f32.mrf.mxu0
    %v844 = vadd.f32 %v675, %v843
    %845 = vmatmul.bf16.gmra.mxu0 %v382
    %v846 = vpop.f32.mrf.mxu0
    %v847 = vadd.f32 %v678, %v846
    %v848 = vpop.f32.mrf.mxu0
    %v849 = vadd.f32 %v680, %v848
    %850 = vmatmul.bf16.gmra.mxu0 %v384
    %v851 = vpop.f32.mrf.mxu0
    %v852 = vadd.f32 %v683, %v851
    %v853 = vpop.f32.mrf.mxu0
    %v854 = vadd.f32 %v685, %v853
    %855 = vmatmul.bf16.gmra.mxu0 %v386
    %v856 = vpop.f32.mrf.mxu0
    %v857 = vadd.f32 %v688, %v856
    %v858 = vpop.f32.mrf.mxu0
    %v859 = vadd.f32 %v690, %v858
    %860 = vmatmul.bf16.gmra.mxu0 %v388
    %v861 = vpop.f32.mrf.mxu0
    %v862 = vadd.f32 %v693, %v861
    %v863 = vpop.f32.mrf.mxu0
    %v864 = vadd.f32 %v695, %v863
    %865 = vmatmul.bf16.gmra.mxu0 %v390
    %v866 = vpop.f32.mrf.mxu0
    %v867 = vadd.f32 %v698, %v866
    %v868 = vpop.f32.mrf.mxu0
    %v869 = vadd.f32 %v700, %v868
    %870 = vmatmul.bf16.gmra.mxu0 %v392
    %v871 = vpop.f32.mrf.mxu0
    %v872 = vadd.f32 %v703, %v871
    %v873 = vpop.f32.mrf.mxu0
    %v874 = vadd.f32 %v705, %v873
    %875 = vmatmul.bf16.gmra.mxu0 %v394
    %v876 = vpop.f32.mrf.mxu0
    %v877 = vadd.f32 %v708, %v876
    %v878 = vpop.f32.mrf.mxu0
    %v879 = vadd.f32 %v710, %v878
    %880 = vmatmul.bf16.gmra.mxu0 %v396
    %v881 = vpop.f32.mrf.mxu0
    %v882 = vadd.f32 %v713, %v881
    %v883 = vpop.f32.mrf.mxu0
    %v884 = vadd.f32 %v715, %v883
    %885 = vmatmul.bf16.gmra.mxu0 %v398
    %v886 = vpop.f32.mrf.mxu0
    %v887 = vadd.f32 %v718, %v886
    %v888 = vpop.f32.mrf.mxu0
    %v889 = vadd.f32 %v720, %v888
    %890 = vmatmul.bf16.gmra.mxu0 %v400
    %v891 = vpop.f32.mrf.mxu0
    %v892 = vadd.f32 %v723, %v891
    %v893 = vpop.f32.mrf.mxu0
    %v894 = vadd.f32 %v725, %v893
    %895 = vmatmul.bf16.gmra.mxu0 %v402
    %v896 = vpop.f32.mrf.mxu0
    %v897 = vadd.f32 %v728, %v896
    %v898 = vpop.f32.mrf.mxu0
    %v899 = vadd.f32 %v730, %v898
    %900 = vdwg.mxu0
    %901 = vst [vmem:[#allocation7] sm:$0xff] %v742
    %902 = vst [vmem:[#allocation7 + $0x8] sm:$0xff] %v744
    %903 = vst [vmem:[#allocation7 + $0x10] sm:$0xff] %v747
    %904 = vst [vmem:[#allocation7 + $0x18] sm:$0xff] %v749
    %905 = vst [vmem:[#allocation7 + $0x20] sm:$0xff] %v752
    %906 = vst [vmem:[#allocation7 + $0x28] sm:$0xff] %v754
    %907 = vst [vmem:[#allocation7 + $0x30] sm:$0xff] %v757
    %908 = vst [vmem:[#allocation7 + $0x38] sm:$0xff] %v759
    %909 = vst [vmem:[#allocation7 + $0x40] sm:$0xff] %v762
    %910 = vst [vmem:[#allocation7 + $0x48] sm:$0xff] %v764
    %911 = vst [vmem:[#allocation7 + $0x50] sm:$0xff] %v767
    %912 = vst [vmem:[#allocation7 + $0x58] sm:$0xff] %v769
    %913 = vst [vmem:[#allocation7 + $0x60] sm:$0xff] %v772
    %914 = vst [vmem:[#allocation7 + $0x68] sm:$0xff] %v774
    %915 = vst [vmem:[#allocation7 + $0x70] sm:$0xff] %v777
    %916 = vst [vmem:[#allocation7 + $0x78] sm:$0xff] %v779
    %917 = vst [vmem:[#allocation7 + $0x80] sm:$0xff] %v782
    %918 = vst [vmem:[#allocation7 + $0x88] sm:$0xff] %v784
    %919 = vst [vmem:[#allocation7 + $0x90] sm:$0xff] %v787
    %920 = vst [vmem:[#allocation7 + $0x98] sm:$0xff] %v789
    %921 = vst [vmem:[#allocation7 + $0xa0] sm:$0xff] %v792
    %922 = vst [vmem:[#allocation7 + $0xa8] sm:$0xff] %v794
    %923 = vst [vmem:[#allocation7 + $0xb0] sm:$0xff] %v797
    %924 = vst [vmem:[#allocation7 + $0xb8] sm:$0xff] %v799
    %925 = vst [vmem:[#allocation7 + $0xc0] sm:$0xff] %v802
    %926 = vst [vmem:[#allocation7 + $0xc8] sm:$0xff] %v804
    %927 = vst [vmem:[#allocation7 + $0xd0] sm:$0xff] %v807
    %928 = vst [vmem:[#allocation7 + $0xd8] sm:$0xff] %v809
    %929 = vst [vmem:[#allocation7 + $0xe0] sm:$0xff] %v812
    %930 = vst [vmem:[#allocation7 + $0xe8] sm:$0xff] %v814
    %931 = vst [vmem:[#allocation7 + $0xf0] sm:$0xff] %v817
    %932 = vst [vmem:[#allocation7 + $0xf8] sm:$0xff] %v819
    %933 = vst [vmem:[#allocation7 + $0x100] sm:$0xff] %v822
    %934 = vst [vmem:[#allocation7 + $0x108] sm:$0xff] %v824
    %935 = vst [vmem:[#allocation7 + $0x110] sm:$0xff] %v827
    %936 = vst [vmem:[#allocation7 + $0x118] sm:$0xff] %v829
    %937 = vst [vmem:[#allocation7 + $0x120] sm:$0xff] %v832
    %938 = vst [vmem:[#allocation7 + $0x128] sm:$0xff] %v834
    %939 = vst [vmem:[#allocation7 + $0x130] sm:$0xff] %v837
    %940 = vst [vmem:[#allocation7 + $0x138] sm:$0xff] %v839
    %941 = vst [vmem:[#allocation7 + $0x140] sm:$0xff] %v842
    %942 = vst [vmem:[#allocation7 + $0x148] sm:$0xff] %v844
    %943 = vst [vmem:[#allocation7 + $0x150] sm:$0xff] %v847
    %944 = vst [vmem:[#allocation7 + $0x158] sm:$0xff] %v849
    %945 = vst [vmem:[#allocation7 + $0x160] sm:$0xff] %v852
    %946 = vst [vmem:[#allocation7 + $0x168] sm:$0xff] %v854
    %947 = vst [vmem:[#allocation7 + $0x170] sm:$0xff] %v857
    %948 = vst [vmem:[#allocation7 + $0x178] sm:$0xff] %v859
    %949 = vst [vmem:[#allocation7 + $0x180] sm:$0xff] %v862
    %950 = vst [vmem:[#allocation7 + $0x188] sm:$0xff] %v864
    %951 = vst [vmem:[#allocation7 + $0x190] sm:$0xff] %v867
    %952 = vst [vmem:[#allocation7 + $0x198] sm:$0xff] %v869
    %953 = vst [vmem:[#allocation7 + $0x1a0] sm:$0xff] %v872
    %954 = vst [vmem:[#allocation7 + $0x1a8] sm:$0xff] %v874
    %955 = vst [vmem:[#allocation7 + $0x1b0] sm:$0xff] %v877
    %956 = vst [vmem:[#allocation7 + $0x1b8] sm:$0xff] %v879
    %957 = vst [vmem:[#allocation7 + $0x1c0] sm:$0xff] %v882
    %958 = vst [vmem:[#allocation7 + $0x1c8] sm:$0xff] %v884
    %959 = vst [vmem:[#allocation7 + $0x1d0] sm:$0xff] %v887
    %960 = vst [vmem:[#allocation7 + $0x1d8] sm:$0xff] %v889
    %961 = vst [vmem:[#allocation7 + $0x1e0] sm:$0xff] %v892
    %962 = vst [vmem:[#allocation7 + $0x1e8] sm:$0xff] %v894
    %963 = vst [vmem:[#allocation7 + $0x1f0] sm:$0xff] %v897
    %964 = vst [vmem:[#allocation7 + $0x1f8] sm:$0xff] %v899
    // Predicated region
    $region22: #{tpu_custom_call.1} parent=1 // pred_check
      _
    $region23: #{tpu_custom_call.1} parent=1 // pred_check_branch
      %966 = sbr.rel (0) target = $region25
    $region24: #{tpu_custom_call.1} parent=1 // pred_region
      %968 = vsyncadd [#allocation4], 0
      %s969 = sshll.u32 [#allocation7], 4
      %s970 = int_to_ptr.vmem [resolvable:$true] %s969
      %s971 = sshll.u32 %s3, 4
      %s972 = int_to_ptr.hbm [resolvable:$true] %s971
      %977 = dma.vmem_to_hbm [thread:$0]  %s970, 8192, %s972, [#allocation4], 128, 128, 8
    $region25: #{tpu_custom_call.1} parent=1 // pred_fallthru
      _
    // Predicated region
    $region26: #{tpu_custom_call.1} parent=1 // pred_check
      _
    $region27: #{tpu_custom_call.1} parent=1 // pred_check_branch
      %979 = sbr.rel (0) target = $region29
    $region28: #{tpu_custom_call.1} parent=1 // pred_region
      %981 = dma.done [#allocation4], 8192
    $region29: #{tpu_custom_call.1} parent=1 // pred_fallthru
      _
    %982 = vsyncpa [#allocation3], 1
    %983 = vsyncpa [#allocation6], 1
    %984 = vsyncpa [#allocation4], 1

</llo_original>
